<compile_context>
chip_gen: v7x
topology: tpu7x:2x2x1
jax: 0.10.0
libtpu: 0.0.40
codegen_flags: <defaults>
</compile_context>

<pallas_src>
import jax
import jax.numpy as jnp
from jax.experimental import pallas as pl
from jax.experimental.pallas import tpu as pltpu


def _linear_fm_kernel(xt_ref, wt_ref, b_ref, o_ref):
    # xt_ref: (IN, TB) VMEM feature-major activations
    # wt_ref: (IN, 1)  VMEM weight column (PyTorch weight.T)
    # b_ref:  (1,)     SMEM bias scalar
    # o_ref:  (1, TB)  VMEM lane-dense output slab
    #
    # Dense VPU multiply (lane-broadcast of the weight column) + cross-sublane
    # reduce over the 10 feature rows -> (1, TB) lane-dense result.  No MXU,
    # no cross-lane XLU reduce trees, no masked stores.
    acc = jnp.sum(xt_ref[...] * wt_ref[...], axis=0, keepdims=True)   # (1, TB) f32
    o_ref[...] = (acc + b_ref[0]).astype(o_ref.dtype)


def _round_up(n, m):
    return ((n + m - 1) // m) * m


def simple_model_forward_feature_major(xt, weight, bias, *,
                                       tile_b=65536, grid_free_max_b=1024):
    """nn.Linear(IN, 1) forward on feature-major activations.

    xt: (IN, B) f32 (feature-major); weight: (1, IN) f32 (PyTorch (out, in));
    bias: (1,) f32.  Returns (B, 1) f32 — same semantics as `self.fc(x)`.
    """
    IN, B = xt.shape
    OUT = weight.shape[0]
    assert weight.shape == (OUT, IN)
    assert bias.shape == (OUT,)
    # Lane-dense (1, tile_b) output slab assumes a single output feature.
    assert OUT == 1
    # Lane (last) dim of the x / out blocks must be a multiple of 128.
    assert tile_b % 128 == 0 and tile_b > 0
    assert grid_free_max_b >= 1

    wt = weight.T  # (IN, 1) column; 10 floats, negligible.

    cost = pl.CostEstimate(
        flops=2 * B * IN * OUT,
        transcendentals=0,
        bytes_accessed=4 * (B * IN + OUT * IN + OUT + B * OUT),
    )

    if B <= grid_free_max_b:
        # Tiny / moderate batch: single invocation, no grid, whole arrays in VMEM.
        out2d = pl.pallas_call(
            _linear_fm_kernel,
            out_shape=jax.ShapeDtypeStruct((OUT, B), xt.dtype),
            in_specs=[
                pl.BlockSpec(memory_space=pltpu.MemorySpace.VMEM),   # xt (whole)
                pl.BlockSpec(memory_space=pltpu.MemorySpace.VMEM),   # weight column
                pl.BlockSpec(memory_space=pltpu.MemorySpace.SMEM),   # bias scalar
            ],
            out_specs=pl.BlockSpec(memory_space=pltpu.MemorySpace.VMEM),
            cost_estimate=cost,
        )(xt, wt, bias)
        return out2d.reshape(B, OUT)

    # Gridded path: big batch tile, but never fewer than 2 grid steps so the
    # "parallel" axis can shard across v7x's two TensorCores (no-op on v5e/v6e).
    tile = min(tile_b, _round_up(pl.cdiv(B, 2), 128))
    grid = (pl.cdiv(B, tile),)

    # VMEM budget (feature-major layout, double-buffered):
    #   x tile : round_up(IN,8) sublanes * tile lanes * 4 B
    #   out    : 8 sublanes * tile lanes * 4 B
    x_buf = _round_up(IN, 8) * tile * 4
    o_buf = 8 * tile * 4
    w_buf = 8 * 128 * 4
    vmem_need = 2 * (x_buf + o_buf + w_buf)
    # Keep at least the 32 MiB scoped default; never exceed v7x's 64 MiB physical.
    vmem_limit = min(max(vmem_need + (4 << 20), 32 << 20), 64 << 20)

    out2d = pl.pallas_call(
        _linear_fm_kernel,
        out_shape=jax.ShapeDtypeStruct((OUT, B), xt.dtype),
        grid=grid,
        in_specs=[
            pl.BlockSpec((IN, tile), lambda i: (0, i)),              # x tile (feature-major)
            pl.BlockSpec((IN, OUT), lambda i: (0, 0)),               # weight column (resident)
            pl.BlockSpec(memory_space=pltpu.MemorySpace.SMEM),       # bias scalar (whole)
        ],
        out_specs=pl.BlockSpec((OUT, tile), lambda i: (0, i)),       # lane-dense slab
        compiler_params=pltpu.CompilerParams(
            dimension_semantics=("parallel",),
            vmem_limit_bytes=vmem_limit,
        ),
        cost_estimate=cost,
    )(xt, wt, bias)
    return out2d.reshape(B, OUT)


def simple_model_forward(x, weight, bias, *, tile_b=65536, grid_free_max_b=1024):
    """nn.Linear(10, 1) forward, batch-major input (matches the PyTorch module).

    x: (B, 10) f32; weight: (1, 10) f32 (PyTorch (out, in) layout); bias: (1,) f32.
    Returns (B, 1) f32 — identical semantics to `self.fc(x)`.
    """
    B, IN = x.shape
    assert weight.shape[1] == IN
    # Layout plumbing only: present feature-major activations to the kernel.
    # TODO(synk): if the upstream producer can emit (IN, B) activations, call
    # simple_model_forward_feature_major() directly and drop this transpose.
    xt = x.T
    return simple_model_forward_feature_major(
        xt, weight, bias, tile_b=tile_b, grid_free_max_b=grid_free_max_b)


if __name__ == "__main__":
    key = jax.random.PRNGKey(0)
    kx, kw, kb, kx2 = jax.random.split(key, 4)

    IN, OUT = 10, 1
    bound = 1.0 / (IN ** 0.5)
    # Deterministic parameter init (mimics nn.Linear's uniform(-1/sqrt(IN), 1/sqrt(IN))).
    weight = jax.random.uniform(kw, (OUT, IN), minval=-bound, maxval=bound, dtype=jnp.float32)
    bias = jax.random.uniform(kb, (OUT,), minval=-bound, maxval=bound, dtype=jnp.float32)

    # Small batch -> grid-free path.
    B = 8
    x = jax.random.normal(kx, (B, IN), dtype=jnp.float32)
    out = simple_model_forward(x, weight, bias)
    jax.block_until_ready(out)
    ref = x @ weight.T + bias
    assert out.shape == (B, OUT)
    assert jnp.allclose(out, ref, atol=1e-5, rtol=1e-5), "small-batch mismatch vs reference"

    # Larger batch -> gridded, lane-dense, >=2-step "parallel" path
    # (also exercises a partial final tile: 5000 rows with a 2560-row tile).
    B2 = 5000
    x2 = jax.random.normal(kx2, (B2, IN), dtype=jnp.float32)
    out2 = simple_model_forward(x2, weight, bias)
    jax.block_until_ready(out2)
    ref2 = x2 @ weight.T + bias
    assert out2.shape == (B2, OUT)
    assert jnp.allclose(out2, ref2, atol=1e-5, rtol=1e-5), "gridded-batch mismatch vs reference"

    print("KERNEL_OK")
</pallas_src>

<mosaic_0001>
module attributes {stable_mosaic.version = 11 : i64} {
  func.func @_linear_fm_kernel(%arg0: memref<10x8xf32, #tpu.memory_space<vmem>>, %arg1: memref<10x1xf32, #tpu.memory_space<vmem>>, %arg2: memref<1xf32, #tpu.memory_space<smem>>, %arg3: memref<1x8xf32, #tpu.memory_space<vmem>>) attributes {dimension_semantics = [], scalar_prefetch = 0 : i64, scratch_operands = 0 : i64, tpu.core_type = #tpu.core_type<tc>} {
    %c0 = arith.constant 0 : index
    %c0_0 = arith.constant 0 : index
    %0 = vector.load %arg0[%c0, %c0_0] : memref<10x8xf32, #tpu.memory_space<vmem>>, vector<10x8xf32>
    %c0_1 = arith.constant 0 : index
    %c0_2 = arith.constant 0 : index
    %1 = vector.load %arg1[%c0_1, %c0_2] : memref<10x1xf32, #tpu.memory_space<vmem>>, vector<10x1xf32>
    %2 = vector.broadcast %1 : vector<10x1xf32> to vector<10x8xf32>
    %3 = arith.mulf %0, %2 : vector<10x8xf32>
    %cst = arith.constant dense<0.000000e+00> : vector<8xf32>
    %4 = vector.multi_reduction <add>, %3, %cst [0] : vector<10x8xf32> to vector<8xf32>
    %5 = vector.shape_cast %4 : vector<8xf32> to vector<1x8xf32>
    %c0_3 = arith.constant 0 : index
    %6 = memref.load %arg2[%c0_3] : memref<1xf32, #tpu.memory_space<smem>>
    %7 = vector.broadcast %6 : f32 to vector<1x8xf32>
    %8 = arith.addf %5, %7 : vector<1x8xf32>
    %c0_4 = arith.constant 0 : index
    %c0_5 = arith.constant 0 : index
    %9 = vector.load %arg3[%c0_4, %c0_5] : memref<1x8xf32, #tpu.memory_space<vmem>>, vector<1x8xf32>
    tpu.vector_store %arg3[%c0_4, %c0_5], %8 {strides = array<i32>} : memref<1x8xf32, #tpu.memory_space<vmem>>, vector<1x8xf32>,
    return
  }
}

</mosaic_0001>

<llo_original>
// kernel: tpu_custom_call.1
$region0: #{tpu_custom_call.1}
  #allocation0 [shape = 'u32[]', space=smem, size = 0x4, offset = 0x4, fixed_abs, tag = 'smem constant byte address 0x4 - core index']
  #allocation1 [shape = 'u32[144,128]{1,0:T(1,128)}', space=vmem, size = 0x12000, scoped, tag = 'internal scratch']
  #allocation2 [shape = 'f32[1]{0:T(128)S(6)}', space=smem, size = 0x200, scoped, tag = 'scoped memory for tpu_custom_call.1']
  %s0 = inlined_call_operand.vmem [shape: f32[10,8], index: 0, kind: input, shape index: {}]
  %s1 = inlined_call_operand.vmem [shape: f32[10,1], index: 1, kind: input, shape index: {}]
  %s2 = inlined_call_operand.<no memory space> [shape: f32[1], index: 2, kind: input, shape index: {}]
  %s3 = inlined_call_operand.hbm [shape: f32[1,8], index: 3, kind: output, shape index: {}]
  %s4 = sld [smem:[#allocation0]]
  $region22: #{tpu_custom_call.1} parent=0
    _
  %s6 = ssub.s32 1, %s4
  %s7 = scalar_select 0, %s6, %s4
  %8 = sst [smem:[#allocation2]] %s2
  $region1: #{tpu_custom_call.1} parent=0
    #allocation3 [shape = 'u8[512]{0}', space=vmem, size = 0x400, scoped, tag = 'output window, operand 0, single buffered']
    #allocation4 [shape = 's32[1]{0}', space=sflag, size = 0x4, scoped, tag = 'scoped memory for tpu_custom_call.1']
    %9 = vsyncpa [#allocation4], 0
    // Predicated region
    $region2: #{tpu_custom_call.1} parent=1 // pred_check
      _
    $region3: #{tpu_custom_call.1} parent=1 // pred_check_branch
      %11 = sbr.rel (0) target = $region5
    $region4: #{tpu_custom_call.1} parent=1 // pred_region
      _
    $region5: #{tpu_custom_call.1} parent=1 // pred_fallthru
      _
    // Predicated region
    $region6: #{tpu_custom_call.1} parent=1 // pred_check
      _
    $region7: #{tpu_custom_call.1} parent=1 // pred_check_branch
      %13 = sbr.rel (0) target = $region9
    $region8: #{tpu_custom_call.1} parent=1 // pred_region
      _
    $region9: #{tpu_custom_call.1} parent=1 // pred_fallthru
      _
    // Predicated region
    $region10: #{tpu_custom_call.1} parent=1 // pred_check
      _
    $region11: #{tpu_custom_call.1} parent=1 // pred_check_branch
      %15 = sbr.rel (0) target = $region13
    $region12: #{tpu_custom_call.1} parent=1 // pred_region
      _
    $region13: #{tpu_custom_call.1} parent=1 // pred_fallthru
      _
    %v16 = vld [vmem:[%s0] sm:$0xff]
    %v17 = vld [vmem:[%s0 + $0x8] sm:$0x3]
    %v18 = vld [vmem:[%s1] sm:$0xff]
    %v19 = vld [vmem:[%s1 + $0x8] sm:$0x3]
    %21 = vset.pattern.permute.xlu0 0
    %22 = vperm.xlu0 %21, %v18
    %v23 = vpop.permute.xlu0 %22
    %26 = vset.pattern.permute.xlu0 0
    %27 = vperm.xlu0 %26, %v19
    %v28 = vpop.permute.xlu0 %27
    %v30 = vmul.f32 %v16, %v23
    %v31 = vmul.f32 %v17, %v28
    %vm32 = vcmask 64512
    %v33 = vsel %vm32, %v30, 0.0
    %vm34 = vcmask 58368
    %v35 = vsel %vm34, %v31, 0.0
    %v36 = vadd.f32 %v33, %v35
    %v37 = vrot.slane %v36, 4
    %v38 = vadd.f32 %v36, %v37
    %v39 = vrot.slane %v38, 2
    %v40 = vadd.f32 %v38, %v39
    %v41 = vrot.slane %v40, 1
    %v42 = vadd.f32 %v40, %v41
    %s43 = sld [smem:[#allocation2]]
    %v44 = vstv %s43
    %v45 = vadd.f32 %v42, %v44
    %vm46 = vcmask 57344
    %47 = vst.msk [vmem:[#allocation3] sm:$0x1] %vm46, %v45
    // Predicated region
    $region14: #{tpu_custom_call.1} parent=1 // pred_check
      _
    $region15: #{tpu_custom_call.1} parent=1 // pred_check_branch
      %49 = sbr.rel (0) target = $region17
    $region16: #{tpu_custom_call.1} parent=1 // pred_region
      %s51 = ssub.s32 16, 16
      %52 = vsyncadd [#allocation4], %s51
      %s54 = sshll.u32 [#allocation3], 4
      %s55 = int_to_ptr.vmem [resolvable:$true] %s54
      %57 = dma.vmem_to_hbm [thread:$0]  %s55, 16, %s3, [#allocation4]
    $region17: #{tpu_custom_call.1} parent=1 // pred_fallthru
      _
    // Predicated region
    $region18: #{tpu_custom_call.1} parent=1 // pred_check
      _
    $region19: #{tpu_custom_call.1} parent=1 // pred_check_branch
      %59 = sbr.rel (0) target = $region21
    $region20: #{tpu_custom_call.1} parent=1 // pred_region
      %60 = dma.done [#allocation4], 16
    $region21: #{tpu_custom_call.1} parent=1 // pred_fallthru
      _
    %61 = vsyncpa [#allocation4], 1

</llo_original>
